<compile_context>
chip_gen: v7x
topology: tpu7x:2x2x1
jax: 0.10.0
libtpu: 0.0.40
codegen_flags: <defaults>
</compile_context>

<pallas_src>
import functools
import math

import jax
import jax.numpy as jnp
from jax.experimental import pallas as pl
from jax.experimental.pallas import tpu as pltpu

_LANE = 128


def _build_pe_table(d_model: int, max_len: int = 5000) -> jnp.ndarray:
    """Sin/cos positional-encoding table, shape (max_len, 1, d_model), float32.

    (PyTorch builds it in float64; JAX defaults to float32 — forward semantics
    of "x + table" are preserved up to f32 rounding of the table.)
    """
    position = jnp.arange(0, max_len, dtype=jnp.float32)[:, None]            # (L, 1)
    div_term = jnp.exp(
        jnp.arange(0, d_model, 2, dtype=jnp.float32) * -(math.log(10000.0) / d_model)
    )                                                                          # (D/2,)
    angles = position * div_term                                               # (L, D/2)
    pe = jnp.zeros((max_len, d_model), dtype=jnp.float32)
    pe = pe.at[:, 0::2].set(jnp.sin(angles))
    pe = pe.at[:, 1::2].set(jnp.cos(angles))
    # match PyTorch: pe.unsqueeze(0).transpose(0, 1) -> (max_len, 1, d_model)
    return pe[:, None, :]


# ---------------------------------------------------------------------------
# Kernels
# ---------------------------------------------------------------------------

def _pe_add_kernel_lane_aligned(x_ref, pe_ref, o_ref, *, batch: int, d_model: int):
    # x_ref/o_ref: (tS, B*D) in x dtype; pe_ref: (tS, D) float32.
    # d_model % 128 == 0 -> every slice below is lane-aligned; pe is loaded once
    # per grid step and reused for every batch element (no replication temp).
    pe = pe_ref[...]                                   # (tS, D) f32
    for b in range(batch):                             # static unroll, aligned slabs
        sl = pl.ds(b * d_model, d_model)
        o_ref[:, sl] = (x_ref[:, sl].astype(jnp.float32) + pe).astype(o_ref.dtype)


def _pe_add_kernel_bcast(x_ref, pe_ref, o_ref):
    # x_ref/o_ref: (tS, B, D) in x dtype; pe_ref: (tS, 1, D) float32.
    # Broadcast over the batch (sublane) dim — cheap sublane broadcast, no tile temp.
    o_ref[...] = (x_ref[...].astype(jnp.float32) + pe_ref[...]).astype(o_ref.dtype)


# ---------------------------------------------------------------------------
# Tiling / VMEM sizing helpers
# ---------------------------------------------------------------------------

def _round_up(x: int, m: int) -> int:
    return ((x + m - 1) // m) * m


def _vmem_capacity_bytes() -> int:
    """Physical per-core VMEM (trace-time query); conservative fallback = 64 MiB."""
    try:
        info = pltpu.get_tpu_info()
        cap = getattr(info, "vmem_capacity_bytes", None)
        if cap:
            return int(cap)
    except Exception:
        pass
    return 64 * 1024 * 1024  # v7x per-TC VMEM (smallest current generation)


def _sublane(itemsize: int) -> int:
    # 8 rows/vreg for 4-byte, 16 for 2-byte (bf16), 32 for 1-byte dtypes.
    return max(8, 32 // itemsize)


def _pick_tile_s(S: int, per_row_bytes: int, budget_bytes: int, sublane: int) -> int:
    """Largest S-tile whose double-buffered footprint fits the budget.

    per_row_bytes: padded VMEM bytes per S-row across all blocks (x + out + pe).
    Prefers >= 2 grid steps even when everything fits (v7x TC sharding + overlap).
    """
    max_ts = max(1, budget_bytes // max(1, 2 * per_row_bytes))   # 2x: double buffer
    if max_ts >= S:
        max_ts = max(1, (S + 1) // 2)                            # >= 2 grid steps
    ts = (max_ts // sublane) * sublane
    if ts == 0:
        ts = min(S, sublane)
    return max(1, min(ts, S))


# ---------------------------------------------------------------------------
# Forward
# ---------------------------------------------------------------------------

def positional_encoding_forward(x: jnp.ndarray, pe_table: jnp.ndarray) -> jnp.ndarray:
    """x: (S, B, D); pe_table: (max_len, 1, D). Returns x + pe[:S] (broadcast over B)."""
    S, B, D = x.shape
    dtype = x.dtype
    itemsize = jnp.dtype(dtype).itemsize
    sublane = _sublane(itemsize)

    # One source number for everything VMEM-related.
    phys = _vmem_capacity_bytes()
    base_limit = phys // 2                  # 64 MiB on v5e/v6e, 32 MiB on v7x
    budget = (base_limit * 3) // 4          # tile budget leaves headroom under the limit

    lane_aligned = (D % _LANE == 0)

    if lane_aligned:
        # Lane-dense 2-D view: (tS, B*D) blocks, tS on sublanes, B*D (mult of 128) on lanes.
        row_x = B * D * itemsize                                   # dense, no padding
        row_pe = D * 4                                             # pe kept in f32
        per_row = 2 * row_x + row_pe                               # x + out + pe per S-row
    else:
        # Native 3-D blocks; account for (sublane, lane) layout padding of (B, D) slabs.
        d_pad = _round_up(D, _LANE)
        row_x = _round_up(B, sublane) * d_pad * itemsize
        row_pe = 8 * d_pad * 4                                     # (1, D) f32 slab pads to 8 sublanes
        per_row = 2 * row_x + row_pe

    tS = _pick_tile_s(S, per_row, budget, sublane)
    footprint = 2 * per_row * tS                                   # actual double-buffered bytes
    vmem_limit = int(min(phys - (4 << 20), max(base_limit, footprint + (4 << 20))))

    grid = (pl.cdiv(S, tS),)
    compiler_params = pltpu.CompilerParams(
        # Independent S-tiles: "parallel" lets v7x shard the grid across both
        # TensorCores; neutral on single-TC v5e/v6e.
        dimension_semantics=("parallel",),
        vmem_limit_bytes=vmem_limit,
    )

    if lane_aligned:
        x_flat = x.reshape(S, B * D)                               # free (contiguous) view
        pe2 = pe_table[:S, 0, :].astype(jnp.float32)               # (S, D)
        out_flat = pl.pallas_call(
            functools.partial(_pe_add_kernel_lane_aligned, batch=B, d_model=D),
            out_shape=jax.ShapeDtypeStruct((S, B * D), dtype),
            grid_spec=pl.GridSpec(
                grid=grid,
                in_specs=[
                    pl.BlockSpec((tS, B * D), lambda i: (i, 0)),
                    pl.BlockSpec((tS, D), lambda i: (i, 0)),
                ],
                out_specs=pl.BlockSpec((tS, B * D), lambda i: (i, 0)),
            ),
            compiler_params=compiler_params,
        )(x_flat, pe2)
        return out_flat.reshape(S, B, D)

    # General path: arbitrary (B, D); last-two block dims are full extents.
    pe3 = pe_table[:S].astype(jnp.float32)                         # (S, 1, D)
    return pl.pallas_call(
        _pe_add_kernel_bcast,
        out_shape=jax.ShapeDtypeStruct((S, B, D), dtype),
        grid_spec=pl.GridSpec(
            grid=grid,
            in_specs=[
                pl.BlockSpec((tS, B, D), lambda i: (i, 0, 0)),
                pl.BlockSpec((tS, 1, D), lambda i: (i, 0, 0)),
            ],
            out_specs=pl.BlockSpec((tS, B, D), lambda i: (i, 0, 0)),
        ),
        compiler_params=compiler_params,
    )(x, pe3)


if __name__ == "__main__":
    key = jax.random.PRNGKey(0)
    k_general, k_aligned = jax.random.split(key)

    # 1) General (narrow-D) path: seq=8, batch=2, d_model=32.
    S, B, D = 8, 2, 32
    MAX_LEN = 64  # keep the table small for the example (module default is 5000)
    pe_table = _build_pe_table(D, max_len=MAX_LEN)
    x = jax.random.normal(k_general, (S, B, D), dtype=jnp.float32)

    fwd = jax.jit(positional_encoding_forward)
    out = jax.block_until_ready(fwd(x, pe_table))
    ref = x + pe_table[:S]
    assert out.shape == (S, B, D)
    assert jnp.allclose(out, ref, atol=1e-6), "mismatch vs reference (general path)"

    # 2) Lane-aligned fast path (d_model % 128 == 0): seq=16, batch=2, d_model=128.
    S2, B2, D2 = 16, 2, 128
    pe_table2 = _build_pe_table(D2, max_len=MAX_LEN)
    x2 = jax.random.normal(k_aligned, (S2, B2, D2), dtype=jnp.float32)

    out2 = jax.block_until_ready(jax.jit(positional_encoding_forward)(x2, pe_table2))
    ref2 = x2 + pe_table2[:S2]
    assert out2.shape == (S2, B2, D2)
    assert jnp.allclose(out2, ref2, atol=1e-6), "mismatch vs reference (lane-aligned path)"

    print("KERNEL_OK")
</pallas_src>

<mosaic_0001>
module attributes {stable_mosaic.version = 11 : i64} {
  func.func @_pe_add_kernel_bcast(%arg0: i32, %arg1: memref<8x2x32xf32, #tpu.memory_space<vmem>>, %arg2: memref<8x1x32xf32, #tpu.memory_space<vmem>>, %arg3: memref<8x2x32xf32, #tpu.memory_space<vmem>>) attributes {dimension_semantics = [#tpu.dimension_semantics<parallel>], iteration_bounds = array<i64: 1>, scalar_prefetch = 0 : i64, scratch_operands = 0 : i64, tpu.core_type = #tpu.core_type<tc>, window_params = [{transform_indices = @transform_0, window_bounds = array<i64: 8, 2, 32>}, {transform_indices = @transform_1, window_bounds = array<i64: 8, 1, 32>}, {transform_indices = @transform_2, window_bounds = array<i64: 8, 2, 32>}]} {
    %c0 = arith.constant 0 : index
    %c0_0 = arith.constant 0 : index
    %c0_1 = arith.constant 0 : index
    %0 = vector.load %arg1[%c0, %c0_0, %c0_1] : memref<8x2x32xf32, #tpu.memory_space<vmem>>, vector<8x2x32xf32>
    %c0_2 = arith.constant 0 : index
    %c0_3 = arith.constant 0 : index
    %c0_4 = arith.constant 0 : index
    %1 = vector.load %arg2[%c0_2, %c0_3, %c0_4] : memref<8x1x32xf32, #tpu.memory_space<vmem>>, vector<8x1x32xf32>
    %2 = vector.broadcast %1 : vector<8x1x32xf32> to vector<8x2x32xf32>
    %3 = arith.addf %0, %2 : vector<8x2x32xf32>
    %c0_5 = arith.constant 0 : index
    %c0_6 = arith.constant 0 : index
    %c0_7 = arith.constant 0 : index
    %4 = vector.load %arg3[%c0_5, %c0_6, %c0_7] : memref<8x2x32xf32, #tpu.memory_space<vmem>>, vector<8x2x32xf32>
    tpu.vector_store %arg3[%c0_5, %c0_6, %c0_7], %3 {strides = array<i32>} : memref<8x2x32xf32, #tpu.memory_space<vmem>>, vector<8x2x32xf32>,
    return
  }
  func.func @transform_0(%arg0: i32) -> (i32, i32, i32) {
    %c0_i32 = arith.constant 0 : i32
    %c0_i32_0 = arith.constant 0 : i32
    %c0_i32_1 = arith.constant 0 : i32
    return %arg0, %c0_i32, %c0_i32_0 : i32, i32, i32
  }
  func.func @transform_1(%arg0: i32) -> (i32, i32, i32) {
    %c0_i32 = arith.constant 0 : i32
    %c0_i32_0 = arith.constant 0 : i32
    %c0_i32_1 = arith.constant 0 : i32
    return %arg0, %c0_i32, %c0_i32_0 : i32, i32, i32
  }
  func.func @transform_2(%arg0: i32) -> (i32, i32, i32) {
    %c0_i32 = arith.constant 0 : i32
    %c0_i32_0 = arith.constant 0 : i32
    %c0_i32_1 = arith.constant 0 : i32
    return %arg0, %c0_i32, %c0_i32_0 : i32, i32, i32
  }
}

</mosaic_0001>

<llo_original>
// kernel: positional_encoding_forward.1
$region0: #{positional_encoding_forward.1}
  #allocation0 [shape = 'u32[]', space=smem, size = 0x4, offset = 0x4, fixed_abs, tag = 'smem constant byte address 0x4 - core index']
  #allocation1 [shape = 'u32[144,128]{1,0:T(1,128)}', space=vmem, size = 0x12000, scoped, tag = 'internal scratch']
  %s0 = inlined_call_operand.vmem [shape: f32[8,2,32], index: 0, kind: input, shape index: {}]
  %s1 = inlined_call_operand.vmem [shape: f32[8,1,32], index: 1, kind: input, shape index: {}]
  %s2 = inlined_call_operand.hbm [shape: f32[8,2,32], index: 2, kind: output, shape index: {}]
  %s3 = sld [smem:[#allocation0]]
  $region18: #{positional_encoding_forward.1} parent=0
    _
  %s5 = ssub.s32 1, %s3
  %s6 = scalar_select 0, %s5, %s3
  $region1: #{positional_encoding_forward.1} parent=0
    #allocation2 [shape = 'u8[8192]{0}', space=vmem, size = 0x2000, scoped, tag = 'output window, operand 0, single buffered']
    #allocation3 [shape = 's32[1]{0}', space=sflag, size = 0x4, scoped, tag = 'scoped memory for positional_encoding_forward.1']
    %7 = vsyncpa [#allocation3], 0
    // Predicated region
    $region2: #{positional_encoding_forward.1} parent=1 // pred_check
      _
    $region3: #{positional_encoding_forward.1} parent=1 // pred_check_branch
      %9 = sbr.rel (0) target = $region5
    $region4: #{positional_encoding_forward.1} parent=1 // pred_region
      _
    $region5: #{positional_encoding_forward.1} parent=1 // pred_fallthru
      _
    // Predicated region
    $region6: #{positional_encoding_forward.1} parent=1 // pred_check
      _
    $region7: #{positional_encoding_forward.1} parent=1 // pred_check_branch
      %11 = sbr.rel (0) target = $region9
    $region8: #{positional_encoding_forward.1} parent=1 // pred_region
      _
    $region9: #{positional_encoding_forward.1} parent=1 // pred_fallthru
      _
    %v12 = vld [vmem:[%s0] sm:$0x3]
    %v13 = vld [vmem:[%s0 + $0x2] sm:$0x3]
    %v14 = vld [vmem:[%s0 + $0x4] sm:$0x3]
    %v15 = vld [vmem:[%s0 + $0x6] sm:$0x3]
    %v16 = vld [vmem:[%s0 + $0x8] sm:$0x3]
    %v17 = vld [vmem:[%s0 + $0xa] sm:$0x3]
    %v18 = vld [vmem:[%s0 + $0xc] sm:$0x3]
    %v19 = vld [vmem:[%s0 + $0xe] sm:$0x3]
    %v20 = vld [vmem:[%s1] sm:$0x1]
    %v21 = vld [vmem:[%s1 + $0x1] sm:$0x1]
    %v22 = vld [vmem:[%s1 + $0x2] sm:$0x1]
    %v23 = vld [vmem:[%s1 + $0x3] sm:$0x1]
    %v24 = vld [vmem:[%s1 + $0x4] sm:$0x1]
    %v25 = vld [vmem:[%s1 + $0x5] sm:$0x1]
    %v26 = vld [vmem:[%s1 + $0x6] sm:$0x1]
    %v27 = vld [vmem:[%s1 + $0x7] sm:$0x1]
    %v36 = vlaneseq
    %v37 = vshrl.u32 %v36, 7
    %v38 = vsub.s32 0, %v37
    %v39 = vrot.slane %v20, %v38
    %v40 = vlaneseq
    %v41 = vshrl.u32 %v40, 7
    %v42 = vsub.s32 0, %v41
    %v43 = vrot.slane %v21, %v42
    %v44 = vlaneseq
    %v45 = vshrl.u32 %v44, 7
    %v46 = vsub.s32 0, %v45
    %v47 = vrot.slane %v22, %v46
    %v48 = vlaneseq
    %v49 = vshrl.u32 %v48, 7
    %v50 = vsub.s32 0, %v49
    %v51 = vrot.slane %v23, %v50
    %v52 = vlaneseq
    %v53 = vshrl.u32 %v52, 7
    %v54 = vsub.s32 0, %v53
    %v55 = vrot.slane %v24, %v54
    %v56 = vlaneseq
    %v57 = vshrl.u32 %v56, 7
    %v58 = vsub.s32 0, %v57
    %v59 = vrot.slane %v25, %v58
    %v60 = vlaneseq
    %v61 = vshrl.u32 %v60, 7
    %v62 = vsub.s32 0, %v61
    %v63 = vrot.slane %v26, %v62
    %v64 = vlaneseq
    %v65 = vshrl.u32 %v64, 7
    %v66 = vsub.s32 0, %v65
    %v67 = vrot.slane %v27, %v66
    %v76 = vadd.f32 %v12, %v39
    %v77 = vadd.f32 %v13, %v43
    %v78 = vadd.f32 %v14, %v47
    %v79 = vadd.f32 %v15, %v51
    %v80 = vadd.f32 %v16, %v55
    %v81 = vadd.f32 %v17, %v59
    %v82 = vadd.f32 %v18, %v63
    %v83 = vadd.f32 %v19, %v67
    %vm84 = vcmask 254976
    %85 = vst.msk [vmem:[#allocation2] sm:$0x3] %vm84, %v76
    %86 = vst.msk [vmem:[#allocation2 + $0x2] sm:$0x3] %vm84, %v77
    %87 = vst.msk [vmem:[#allocation2 + $0x4] sm:$0x3] %vm84, %v78
    %88 = vst.msk [vmem:[#allocation2 + $0x6] sm:$0x3] %vm84, %v79
    %89 = vst.msk [vmem:[#allocation2 + $0x8] sm:$0x3] %vm84, %v80
    %90 = vst.msk [vmem:[#allocation2 + $0xa] sm:$0x3] %vm84, %v81
    %91 = vst.msk [vmem:[#allocation2 + $0xc] sm:$0x3] %vm84, %v82
    %92 = vst.msk [vmem:[#allocation2 + $0xe] sm:$0x3] %vm84, %v83
    // Predicated region
    $region10: #{positional_encoding_forward.1} parent=1 // pred_check
      _
    $region11: #{positional_encoding_forward.1} parent=1 // pred_check_branch
      %94 = sbr.rel (0) target = $region13
    $region12: #{positional_encoding_forward.1} parent=1 // pred_region
      %s96 = ssub.s32 256, 256
      %97 = vsyncadd [#allocation3], %s96
      %s98 = sshll.u32 [#allocation2], 4
      %s99 = int_to_ptr.vmem [resolvable:$true] %s98
      %104 = dma.vmem_to_hbm [thread:$0]  %s99, 256, %s2, [#allocation3], 32, 32, 2
    $region13: #{positional_encoding_forward.1} parent=1 // pred_fallthru
      _
    // Predicated region
    $region14: #{positional_encoding_forward.1} parent=1 // pred_check
      _
    $region15: #{positional_encoding_forward.1} parent=1 // pred_check_branch
      %106 = sbr.rel (0) target = $region17
    $region16: #{positional_encoding_forward.1} parent=1 // pred_region
      %107 = dma.done [#allocation3], 256
    $region17: #{positional_encoding_forward.1} parent=1 // pred_fallthru
      _
    %108 = vsyncpa [#allocation3], 1

</llo_original>
